<compile_context>
chip_gen: v7x
topology: tpu7x:2x2x1
jax: 0.10.0
libtpu: 0.0.40
codegen_flags: <defaults>
</compile_context>

<pallas_src>
import functools

import numpy as np
import jax
import jax.numpy as jnp
from jax.experimental import pallas as pl
from jax.experimental.pallas import tpu as pltpu


def _round_up(x, m):
    return ((x + m - 1) // m) * m


def _pick_row_tile(n, tile_m, min_steps=2):
    """Row tile: multiple of 8, capped so the grid has >= min_steps steps
    (needed for software pipelining and v7x 2-TensorCore sharding)."""
    n8 = _round_up(max(int(n), 1), 8)
    tm = min(int(tile_m), n8)
    target = _round_up(pl.cdiv(n8, min_steps), 8)
    return max(8, min(tm, target))


@functools.lru_cache(maxsize=1)
def _vmem_limit_bytes():
    """~3/4 of physical VMEM (≈48 MiB on v7x, ≈96-100 MiB on v5e/v6e)."""
    try:
        cap = int(pltpu.get_tpu_info().vmem_capacity_bytes)
    except Exception:
        cap = 64 * 1024 * 1024
    return int(min(cap * 3 // 4, 100 * 1024 * 1024))


# ---------------------------------------------------------------------------
# Kernel 1: theta (Linear)    Y = X @ W + b
# ---------------------------------------------------------------------------
def _linear_kernel(x_ref, w_ref, b_ref, y_ref):
    # Operands stay in their stored dtype -> native MXU path, f32 accumulation.
    y = jnp.dot(x_ref[...], w_ref[...], preferred_element_type=jnp.float32)
    y = y + b_ref[...].astype(jnp.float32)
    y_ref[...] = y.astype(y_ref.dtype)


def linear_pallas(x, w, b, *, tile_m=1024):
    """x:[N,Cin], w:[Cin,Cp] (pre-transposed, lane-padded), b:[1,Cp] -> [N,Cp] f32."""
    n, cin = x.shape
    cp = w.shape[1]
    tm = _pick_row_tile(n, tile_m)
    n_pad = _round_up(n, tm)
    if n_pad != n:
        x = jnp.pad(x, ((0, n_pad - n), (0, 0)))
    x_bytes = n_pad * cin * jnp.dtype(x.dtype).itemsize
    w_bytes = cin * cp * jnp.dtype(w.dtype).itemsize
    b_bytes = cp * jnp.dtype(b.dtype).itemsize
    o_bytes = n_pad * cp * 4
    cost = pl.CostEstimate(flops=2 * n_pad * cin * cp, transcendentals=0,
                           bytes_accessed=x_bytes + w_bytes + b_bytes + o_bytes)
    y = pl.pallas_call(
        _linear_kernel,
        out_shape=jax.ShapeDtypeStruct((n_pad, cp), jnp.float32),
        grid=(n_pad // tm,),
        in_specs=[
            pl.BlockSpec((tm, cin), lambda i: (i, 0)),    # activation row tile
            # Constant blocks; TODO(synk): pipeline_mode=pl.Buffered(1) to
            # single-buffer them once that path is robust everywhere.
            pl.BlockSpec((cin, cp), lambda i: (0, 0)),    # weight resident
            pl.BlockSpec((1, cp), lambda i: (0, 0)),      # bias resident
        ],
        out_specs=pl.BlockSpec((tm, cp), lambda i: (i, 0)),
        compiler_params=pltpu.CompilerParams(
            dimension_semantics=("parallel",),
            vmem_limit_bytes=_vmem_limit_bytes()),
        cost_estimate=cost,
    )(x, w, b)
    return y[:n]


# ---------------------------------------------------------------------------
# Kernel 2: GCN smoothing (+ fused ReLU)    Z = relu(A_norm @ Y)
#   K-tiled contraction with an f32 VMEM accumulator; bf16 operands.
# ---------------------------------------------------------------------------
def _smooth_kernel(a_ref, y_ref, o_ref, acc_ref, *, apply_relu):
    @pl.when(pl.program_id(1) == 0)
    def _init():
        acc_ref[...] = jnp.zeros_like(acc_ref)

    acc_ref[...] += jnp.dot(a_ref[...], y_ref[...],
                            preferred_element_type=jnp.float32)

    @pl.when(pl.program_id(1) == pl.num_programs(1) - 1)
    def _finalize():
        z = acc_ref[...]
        if apply_relu:
            z = jnp.maximum(z, 0.0)
        o_ref[...] = z.astype(o_ref.dtype)


def smoothing_pallas(a_norm, y, *, apply_relu, tile_m, tile_k):
    """a_norm:[R,K] pre-padded (R%tile_m==0, K%tile_k==0), bf16; y:[n,Cp], Cp%128==0.
    Returns [R,Cp] f32 (rows >= n are padding)."""
    r, k = a_norm.shape
    n, cp = y.shape
    assert r % tile_m == 0 and k % tile_k == 0 and cp % 128 == 0
    if k != n:
        y = jnp.pad(y, ((0, k - n), (0, 0)))    # small: O(pad * Cp)
    a_bytes = r * k * jnp.dtype(a_norm.dtype).itemsize
    y_bytes = k * cp * jnp.dtype(y.dtype).itemsize
    o_bytes = r * cp * 4
    cost = pl.CostEstimate(flops=2 * r * k * cp, transcendentals=0,
                           bytes_accessed=a_bytes + y_bytes + o_bytes)
    kernel = functools.partial(_smooth_kernel, apply_relu=apply_relu)
    return pl.pallas_call(
        kernel,
        out_shape=jax.ShapeDtypeStruct((r, cp), jnp.float32),
        grid=(r // tile_m, k // tile_k),
        in_specs=[
            pl.BlockSpec((tile_m, tile_k), lambda i, kk: (i, kk)),  # A panel
            pl.BlockSpec((tile_k, cp), lambda i, kk: (kk, 0)),      # Y k-slab
        ],
        out_specs=pl.BlockSpec((tile_m, cp), lambda i, kk: (i, 0)),
        scratch_shapes=[pltpu.VMEM((tile_m, cp), jnp.float32)],
        compiler_params=pltpu.CompilerParams(
            dimension_semantics=("parallel", "arbitrary"),
            vmem_limit_bytes=_vmem_limit_bytes()),
        cost_estimate=cost,
    )(a_norm, y)


# ---------------------------------------------------------------------------
# Host-side hypergraph -> weighted-graph construction (data dependent; the
# original PyTorch forward also does this with Python list ops / .tolist()).
# ---------------------------------------------------------------------------
def build_e_list(vertex, edges):
    """Mirror of the original forward's e_list construction (incl. its
    dataset-specific pad vertices for degenerate size-1/2 hyperedges)."""
    vertex = np.asarray(jax.device_get(vertex))
    edges = np.asarray(jax.device_get(edges))
    e_list = []
    for idx in range(int(edges.max()) + 1):
        ee = tuple(int(v) for v in vertex[np.where(edges == idx)[0]])
        if len(ee) == 1:
            ee = ee + (1314, 3473)
        elif len(ee) == 2:
            ee = ee + (3473,)
        e_list.append(ee)
    return e_list


def hypergcn_normalized_adjacency(num_v, e_list, scores, use_mediator=True,
                                  pad_rows=None, pad_cols=None,
                                  out_dtype=np.float32):
    """HyperGCN graph construction + GCN normalization: D^-1/2 (A+I) D^-1/2.
    Returns a zero-padded [pad_rows, pad_cols] array in out_dtype."""
    scores = np.asarray(scores, np.float32).reshape(-1)
    all_v = [v for e in e_list for v in e]
    if all_v and (min(all_v) < 0 or max(all_v) >= num_v):
        raise ValueError(
            f"hyperedge vertex id out of range [0, {num_v}) "
            f"(min={min(all_v)}, max={max(all_v)}); check incidence data / pad ids")

    a = np.zeros((num_v, num_v), np.float32)

    def add(u, v, w):
        if u != v:
            a[u, v] += w
            a[v, u] += w

    for e in e_list:
        k = len(e)
        if k < 2:
            continue
        s = scores[np.asarray(e)]
        ia, ib = int(np.argmax(s)), int(np.argmin(s))
        va, vb = e[ia], e[ib]
        if (not use_mediator) or k <= 2:
            add(va, vb, 1.0 / k)
        else:
            w = 1.0 / (2 * k - 3)
            add(va, vb, w)
            for j in range(k):
                if j != ia and j != ib:
                    add(va, e[j], w)   # mediator edges
                    add(vb, e[j], w)

    a_hat = a + np.eye(num_v, dtype=np.float32)
    d_inv_sqrt = 1.0 / np.sqrt(np.maximum(a_hat.sum(axis=1), 1e-12))
    a_norm = a_hat * d_inv_sqrt[:, None] * d_inv_sqrt[None, :]

    pr = int(pad_rows) if pad_rows is not None else num_v
    pc = int(pad_cols) if pad_cols is not None else num_v
    out = np.zeros((pr, pc), dtype=out_dtype)
    out[:num_v, :num_v] = a_norm
    return out


# ---------------------------------------------------------------------------
# Module-level forward
# ---------------------------------------------------------------------------
def init_hypergcn_params(key, in_channels, out_channels):
    kw, kb, kr = jax.random.split(key, 3)
    bound = 1.0 / float(np.sqrt(in_channels))
    w = jax.random.uniform(kw, (in_channels, out_channels), jnp.float32, -bound, bound)
    b = jax.random.uniform(kb, (1, out_channels), jnp.float32, -bound, bound)
    # Random projection vector for the per-hyperedge (argmax, argmin) pick
    # (dhg draws this with torch.rand; deterministic jax key here).
    rv = jax.random.uniform(kr, (out_channels,), jnp.float32)
    return dict(w=w, b=b, rv=rv)


def hypergcn_conv_forward(params, x, vertex, edges, *, is_last=False, use_mediator=True):
    num_v = x.shape[0]
    cout = params["w"].shape[1]
    c_pad = _round_up(cout, 128)                       # lane-dense output stores
    w_pad = jnp.pad(params["w"], ((0, 0), (0, c_pad - cout)))
    b_pad = jnp.pad(params["b"], ((0, 0), (0, c_pad - cout)))

    # 1) theta (Pallas kernel), f32 activations
    y = linear_pallas(x, w_pad, b_pad)                 # [num_v, c_pad] f32

    # 2) per-vertex scores on device in f32 (argmax/argmin pick must stay f32);
    #    only N floats cross the PCIe boundary.
    scores = jax.device_get(jnp.dot(y[:, :cout], params["rv"]))

    #    hypergraph -> weighted graph (host side, like the original list ops).
    #    Built pre-padded + bf16 on host: halves H2D bytes, no device-side pad.
    # TODO(synk): for large graphs ship a sparse COO adjacency + scalar-prefetch
    # SpMM kernel instead of this dense N x N path.
    e_list = build_e_list(vertex, edges)
    tile_m = _pick_row_tile(num_v, 1024)
    tile_k = min(512, _round_up(num_v, 128))
    n_pad_rows = _round_up(num_v, tile_m)
    n_pad_k = _round_up(num_v, tile_k)
    a_host = hypergcn_normalized_adjacency(
        num_v, e_list, scores, use_mediator,
        pad_rows=n_pad_rows, pad_cols=n_pad_k, out_dtype=jnp.bfloat16)
    a_norm = jnp.asarray(a_host)                       # bf16 H2D transfer

    # 3) GCN smoothing + fused ReLU (Pallas kernel); dropout p=0.0 -> identity.
    # TODO(synk): dropout with p>0 (training) would use pltpu.prng_seed /
    # pltpu.prng_random_bits inside the smoothing kernel.
    z = smoothing_pallas(a_norm, y.astype(jnp.bfloat16),
                         apply_relu=not is_last, tile_m=tile_m, tile_k=tile_k)
    return z[:num_v, :cout]


def hypergcn_conv_reference(params, x, vertex, edges, *, is_last=False, use_mediator=True):
    """Numpy reference mirroring the kernels' operand precision (bf16 smoothing
    operands, f32 accumulation) for correctness checking."""
    num_v = x.shape[0]
    x_np = np.asarray(jax.device_get(x), np.float32)
    w_np = np.asarray(jax.device_get(params["w"]), np.float32)
    b_np = np.asarray(jax.device_get(params["b"]), np.float32)
    rv_np = np.asarray(jax.device_get(params["rv"]), np.float32)
    y = x_np @ w_np + b_np
    scores = y @ rv_np
    e_list = build_e_list(vertex, edges)
    a_norm = hypergcn_normalized_adjacency(num_v, e_list, scores, use_mediator)
    a_bf = a_norm.astype(jnp.bfloat16).astype(np.float32)
    y_bf = y.astype(jnp.bfloat16).astype(np.float32)
    z = a_bf @ y_bf
    if not is_last:
        z = np.maximum(z, 0.0)
    return z


if __name__ == "__main__":
    key = jax.random.PRNGKey(0)
    k_params, k_x, k_edges = jax.random.split(key, 3)

    num_v = 64
    in_channels = 32
    out_channels = 32
    num_e = 12

    params = init_hypergcn_params(k_params, in_channels, out_channels)
    x = jax.random.normal(k_x, (num_v, in_channels), jnp.float32)

    # Small deterministic hypergraph as (vertex, edges) incidence lists; every
    # hyperedge has >= 3 members so the dataset-specific padding ids never fire.
    vertex_list, edge_list = [], []
    for e_idx in range(num_e):
        size = 3 + (e_idx % 4)
        members = jax.random.permutation(jax.random.fold_in(k_edges, e_idx), num_v)[:size]
        vertex_list.extend(int(v) for v in np.asarray(members))
        edge_list.extend([e_idx] * size)
    vertex = jnp.asarray(vertex_list, jnp.int32)
    edges = jnp.asarray(edge_list, jnp.int32)

    out = hypergcn_conv_forward(params, x, vertex, edges, is_last=False)
    out = jax.block_until_ready(out)

    ref = hypergcn_conv_reference(params, x, vertex, edges, is_last=False)
    assert out.shape == (num_v, out_channels)
    assert np.allclose(np.asarray(out), ref, atol=2e-2, rtol=2e-2), "mismatch vs reference"

    print("KERNEL_OK")
</pallas_src>

<mosaic_0001>
module attributes {stable_mosaic.version = 11 : i64} {
  func.func @_linear_kernel(%arg0: i32, %arg1: memref<32x32xf32, #tpu.memory_space<vmem>>, %arg2: memref<32x128xf32, #tpu.memory_space<vmem>>, %arg3: memref<1x128xf32, #tpu.memory_space<vmem>>, %arg4: memref<32x128xf32, #tpu.memory_space<vmem>>) attributes {dimension_semantics = [#tpu.dimension_semantics<parallel>], iteration_bounds = array<i64: 2>, scalar_prefetch = 0 : i64, scratch_operands = 0 : i64, tpu.core_type = #tpu.core_type<tc>, window_params = [{transform_indices = @transform_0, window_bounds = array<i64: 32, 32>}, {pipeline_mode = #tpu.pipeline_mode<synchronous>, transform_indices = @transform_1, window_bounds = array<i64: 32, 128>}, {pipeline_mode = #tpu.pipeline_mode<synchronous>, transform_indices = @transform_2, window_bounds = array<i64: 1, 128>}, {transform_indices = @transform_3, window_bounds = array<i64: 32, 128>}]} {
    %c0 = arith.constant 0 : index
    %c0_0 = arith.constant 0 : index
    %0 = vector.load %arg1[%c0, %c0_0] : memref<32x32xf32, #tpu.memory_space<vmem>>, vector<32x32xf32>
    %c0_1 = arith.constant 0 : index
    %c0_2 = arith.constant 0 : index
    %1 = vector.load %arg2[%c0_1, %c0_2] : memref<32x128xf32, #tpu.memory_space<vmem>>, vector<32x128xf32>
    %cst = arith.constant dense<0.000000e+00> : vector<32x128xf32>
    %2 = tpu.matmul %0, %1, %cst {dimension_numbers = #tpu.dot_dimension_numbers<[1], [0], [0], [1], [0, 0, 1, 1], [], []>} : vector<32x32xf32>, vector<32x128xf32>, vector<32x128xf32> -> vector<32x128xf32>
    %c0_3 = arith.constant 0 : index
    %c0_4 = arith.constant 0 : index
    %3 = vector.load %arg3[%c0_3, %c0_4] : memref<1x128xf32, #tpu.memory_space<vmem>>, vector<1x128xf32>
    %4 = vector.broadcast %3 : vector<1x128xf32> to vector<32x128xf32>
    %5 = arith.addf %2, %4 : vector<32x128xf32>
    %c0_5 = arith.constant 0 : index
    %c0_6 = arith.constant 0 : index
    %6 = vector.load %arg4[%c0_5, %c0_6] : memref<32x128xf32, #tpu.memory_space<vmem>>, vector<32x128xf32>
    tpu.vector_store %arg4[%c0_5, %c0_6], %5 {strides = array<i32>} : memref<32x128xf32, #tpu.memory_space<vmem>>, vector<32x128xf32>,
    return
  }
  func.func @transform_0(%arg0: i32) -> (i32, i32) {
    %c0_i32 = arith.constant 0 : i32
    %c0_i32_0 = arith.constant 0 : i32
    return %arg0, %c0_i32 : i32, i32
  }
  func.func @transform_1(%arg0: i32) -> (i32, i32) {
    %c0_i32 = arith.constant 0 : i32
    %c0_i32_0 = arith.constant 0 : i32
    %c0_i32_1 = arith.constant 0 : i32
    return %c0_i32, %c0_i32_0 : i32, i32
  }
  func.func @transform_2(%arg0: i32) -> (i32, i32) {
    %c0_i32 = arith.constant 0 : i32
    %c0_i32_0 = arith.constant 0 : i32
    %c0_i32_1 = arith.constant 0 : i32
    return %c0_i32, %c0_i32_0 : i32, i32
  }
  func.func @transform_3(%arg0: i32) -> (i32, i32) {
    %c0_i32 = arith.constant 0 : i32
    %c0_i32_0 = arith.constant 0 : i32
    return %arg0, %c0_i32 : i32, i32
  }
}

</mosaic_0001>

<llo_original>
// kernel: tpu_custom_call.1
$region0: #{tpu_custom_call.1}
  #allocation0 [shape = 'u32[]', space=smem, size = 0x4, offset = 0x4, fixed_abs, tag = 'smem constant byte address 0x4 - core index']
  #allocation1 [shape = 'u32[144,128]{1,0:T(1,128)}', space=vmem, size = 0x12000, scoped, tag = 'internal scratch']
  %s0 = inlined_call_operand.vmem [shape: f32[64,32], index: 0, kind: input, shape index: {}]
  %s1 = inlined_call_operand.vmem [shape: f32[32,128], index: 1, kind: input, shape index: {}]
  %s2 = inlined_call_operand.vmem [shape: f32[1,128], index: 2, kind: input, shape index: {}]
  %s3 = inlined_call_operand.hbm [shape: f32[64,128], index: 3, kind: output, shape index: {}]
  %s4 = sld [smem:[#allocation0]]
  $region45: #{tpu_custom_call.1} parent=0
    _
  %s6 = ssub.s32 1, %s4
  %s7 = scalar_select 0, %s6, %s4
  $region1: #{tpu_custom_call.1} parent=0
    #allocation2 [shape = 'u8[32768]{0}', space=vmem, size = 0x8000, scoped, tag = 'output window, operand 0']
    #allocation3 [shape = 's32[2]{0}', space=sflag, size = 0x8, scoped, tag = 'scoped memory for tpu_custom_call.1']
    %8 = vsyncpa [#allocation3], 0
    %s9 = scalar_lea.sflag [#allocation3], 1
    %10 = vsyncpa %s9, 0
    loop: start=0, step=1, limit=4
    $region2: #{tpu_custom_call.1} parent=1 // loop_pre_header
      _
    $region3: #{tpu_custom_call.1} parent=1 // loop_header
      %s12 = sphi 0, %s16
      %p13 = scmp.ge.s32.totalorder %s12, 4
      %s22 = sphi 0, %s24
      %s25 = sphi 0, %s22
      %s26 = sphi 0, %s25
      %s42 = sphi 0, %s26
      %s46 = sphi 0, %s46
      %s48 = sphi 0, %s46
      %s49 = sphi 0, %s48
      %s63 = sphi 0, %s49
      %s67 = sphi 0, %s67
      %s69 = sphi 0, %s67
      %s70 = sphi 0, %s69
      %s84 = sphi 0, %s70
      %s90 = sphi 0, %s92
      %s93 = sphi 0, %s90
      %s94 = sphi 0, %s93
      %s110 = sphi 0, %s94
    $region4: #{tpu_custom_call.1} parent=1 // loop_header_branch
      %15 = sbr.rel (%p13) target = $region8
    $region5: #{tpu_custom_call.1} parent=1 // loop_body
      %s17 = ssub.s32 %s12, 1
      %s18 = ssub.s32 %s12, 2
      %s19 = sadd.s32 %s12, 1
      %s20 = ssub.s32 %s12, %s19
      %p21 = scmp.eq.s32.totalorder %s20, 0
      %s23 = sadd.s32 %s22, 1
      %s24 = scalar_select %p21, %s22, %s23
      %p27 = pneg %p21
      %p28 = scmp.eq.s32.totalorder %s12, 1
      %p29 = por %p27, %p28
      %p30 = scmp.ne.s32.totalorder %s22, %s25
      %p31 = scmp.eq.s32.totalorder %s12, 0
      %p32 = por %p30, %p31
      %p33 = scmp.ne.s32.totalorder %s22, %s25
      %p34 = scmp.eq.s32.totalorder %s17, 1
      %p35 = por %p33, %p34
      %p36 = scmp.ne.s32.totalorder %s25, %s26
      %p37 = scmp.eq.s32.totalorder %s17, 0
      %p38 = por %p36, %p37
      %p39 = scmp.ne.s32.totalorder %s25, %s26
      %p40 = scmp.eq.s32.totalorder %s18, 1
      %p41 = por %p39, %p40
      %p43 = scmp.ne.s32.totalorder %s26, %s42
      %p44 = scmp.eq.s32.totalorder %s18, 0
      %p45 = por %p43, %p44
      %s47 = sadd.s32 %s46, 1
      %p50 = scmp.eq.s32.totalorder %s12, 1
      %p51 = scmp.ne.s32.totalorder %s46, %s48
      %p52 = scmp.eq.s32.totalorder %s12, 0
      %p53 = por %p51, %p52
      %p54 = scmp.ne.s32.totalorder %s46, %s48
      %p55 = scmp.eq.s32.totalorder %s17, 1
      %p56 = por %p54, %p55
      %p57 = scmp.ne.s32.totalorder %s48, %s49
      %p58 = scmp.eq.s32.totalorder %s17, 0
      %p59 = por %p57, %p58
      %p60 = scmp.ne.s32.totalorder %s48, %s49
      %p61 = scmp.eq.s32.totalorder %s18, 1
      %p62 = por %p60, %p61
      %p64 = scmp.ne.s32.totalorder %s49, %s63
      %p65 = scmp.eq.s32.totalorder %s18, 0
      %p66 = por %p64, %p65
      %s68 = sadd.s32 %s67, 1
      %p71 = scmp.eq.s32.totalorder %s12, 1
      %p72 = scmp.ne.s32.totalorder %s67, %s69
      %p73 = scmp.eq.s32.totalorder %s12, 0
      %p74 = por %p72, %p73
      %p75 = scmp.ne.s32.totalorder %s67, %s69
      %p76 = scmp.eq.s32.totalorder %s17, 1
      %p77 = por %p75, %p76
      %p78 = scmp.ne.s32.totalorder %s69, %s70
      %p79 = scmp.eq.s32.totalorder %s17, 0
      %p80 = por %p78, %p79
      %p81 = scmp.ne.s32.totalorder %s69, %s70
      %p82 = scmp.eq.s32.totalorder %s18, 1
      %p83 = por %p81, %p82
      %p85 = scmp.ne.s32.totalorder %s70, %s84
      %p86 = scmp.eq.s32.totalorder %s18, 0
      %p87 = por %p85, %p86
      %s88 = ssub.s32 %s12, %s19
      %p89 = scmp.eq.s32.totalorder %s88, 0
      %s91 = sadd.s32 %s90, 1
      %s92 = scalar_select %p89, %s90, %s91
      %p95 = pneg %p89
      %p96 = scmp.eq.s32.totalorder %s12, 1
      %p97 = por %p95, %p96
      %p98 = scmp.ne.s32.totalorder %s90, %s93
      %p99 = scmp.eq.s32.totalorder %s12, 0
      %p100 = por %p98, %p99
      %p101 = scmp.ne.s32.totalorder %s90, %s93
      %p102 = scmp.eq.s32.totalorder %s17, 1
      %p103 = por %p101, %p102
      %p104 = scmp.ne.s32.totalorder %s93, %s94
      %p105 = scmp.eq.s32.totalorder %s17, 0
      %p106 = por %p104, %p105
      %p107 = scmp.ne.s32.totalorder %s93, %s94
      %p108 = scmp.eq.s32.totalorder %s18, 1
      %p109 = por %p107, %p108
      %p111 = scmp.ne.s32.totalorder %s94, %s110
      %p112 = scmp.eq.s32.totalorder %s18, 0
      %p113 = por %p111, %p112
      %p114 = scmp.le.s32.totalorder 1, %s12
      %p115 = scmp.lt.s32.totalorder %s12, 3
      %p116 = pnand %p114, %p115
      %p117 = pneg %p116
      // Predicated region
      $region9: #{tpu_custom_call.1} parent=5 // pred_check
        _
      $region10: #{tpu_custom_call.1} parent=5 // pred_check_branch
        %119 = sbr.rel (%p116) target = $region12
      $region11: #{tpu_custom_call.1} parent=5 // pred_region
        %s120 = ssub.s32 %s12, 1
        // Predicated region
        $region13: #{tpu_custom_call.1} parent=11 // pred_check
          %p121 = pneg %p59
        $region14: #{tpu_custom_call.1} parent=11 // pred_check_branch
          %123 = sbr.rel (%p121) target = $region16
        $region15: #{tpu_custom_call.1} parent=11 // pred_region
          _
        $region16: #{tpu_custom_call.1} parent=11 // pred_fallthru
          _
        // Predicated region
        $region17: #{tpu_custom_call.1} parent=11 // pred_check
          %p124 = pneg %p80
        $region18: #{tpu_custom_call.1} parent=11 // pred_check_branch
          %126 = sbr.rel (%p124) target = $region20
        $region19: #{tpu_custom_call.1} parent=11 // pred_region
          _
        $region20: #{tpu_custom_call.1} parent=11 // pred_fallthru
          _
      $region12: #{tpu_custom_call.1} parent=5 // pred_fallthru
        _
      %p127 = scmp.lt.s32.totalorder %s12, 2
      // Predicated region
      $region21: #{tpu_custom_call.1} parent=5 // pred_check
        %p128 = pneg %p127
      $region22: #{tpu_custom_call.1} parent=5 // pred_check_branch
        %130 = sbr.rel (%p128) target = $region24
      $region23: #{tpu_custom_call.1} parent=5 // pred_region
        // Predicated region
        $region25: #{tpu_custom_call.1} parent=23 // pred_check
          %p131 = pneg %p32
        $region26: #{tpu_custom_call.1} parent=23 // pred_check_branch
          %133 = sbr.rel (%p131) target = $region28
        $region27: #{tpu_custom_call.1} parent=23 // pred_region
          %s134 = smul.u32 4, %s12
          %p135 = scmp.lt.s32.totalorder %s134, 7
          %s136 = scalar_select %p135, %s134, 7
          %s137 = smul.addr %s136, 8
          %s138 = scalar_lea.vmem %s0, %s137
          %s139 = smul.u32 4, %s12
        $region28: #{tpu_custom_call.1} parent=23 // pred_fallthru
          _
      $region24: #{tpu_custom_call.1} parent=5 // pred_fallthru
        _
      %p140 = scmp.le.s32.totalorder 1, %s12
      %p141 = scmp.lt.s32.totalorder %s12, 3
      %p142 = pnand %p140, %p141
      %p143 = pneg %p142
      // Predicated region
      $region29: #{tpu_custom_call.1} parent=5 // pred_check
        _
      $region30: #{tpu_custom_call.1} parent=5 // pred_check_branch
        %145 = sbr.rel (%p142) target = $region32
      $region31: #{tpu_custom_call.1} parent=5 // pred_region
        %s146 = ssub.s32 %s12, 1
        %s147 = smul.u32 4, %s17
        %p148 = scmp.lt.s32.totalorder %s147, 7
        %s149 = scalar_select %p148, %s147, 7
        %s150 = smul.addr %s149, 8
        %s151 = scalar_lea.vmem %s0, %s150
        %p152 = pneg %p38
        %p153 = pneg %p35
        %p154 = pneg %p59
        %p155 = pneg %p56
        %p156 = pneg %p80
        %p157 = pneg %p77
        %p158 = pneg %p106
        %p159 = pneg %p103
        %s160 = sand.u32 %s93, 1
        %s161 = scalar_lea.sflag [#allocation3], %s160
        %s162 = sand.u32 %s93, 1
        %s163 = smul.addr %s162, 32
        %s164 = scalar_lea.vmem [#allocation2], %s163
        %s165 = smul.u32 4, %s17
        %p166 = scmp.lt.s32.totalorder %s165, 7
        %s167 = scalar_select %p166, %s165, 7
        %s168 = smul.addr %s167, 8
        %s169 = scalar_lea.vmem %s0, %s168
        %s170 = smul.u32 4, %s17
        %s171 = smul.u32 4, %s17
        %v172 = vld [vmem:[%s169] sm:$0xff]
        %v173 = vld [vmem:[%s169 + $0x8] sm:$0xff]
        %v174 = vld [vmem:[%s169 + $0x10] sm:$0xff]
        %v175 = vld [vmem:[%s169 + $0x18] sm:$0xff]
        %v176 = vld [vmem:[%s1] sm:$0xff]
        %v177 = vld [vmem:[%s1 + $0x8] sm:$0xff]
        %v178 = vld [vmem:[%s1 + $0x10] sm:$0xff]
        %v179 = vld [vmem:[%s1 + $0x18] sm:$0xff]
        %v180 = vld [vmem:[%s2] sm:$0x1]
        %v182 = vlaneseq
        %v183 = vshrl.u32 %v182, 7
        %v184 = vsub.s32 0, %v183
        %v185 = vrot.slane %v180, %v184
        %vm187 = vcmask 261120
        %v189 = vsel %vm187, %v172, 0
        %v192 = vsel %vm187, %v173, 0
        %v195 = vsel %vm187, %v174, 0
        %v198 = vsel %vm187, %v175, 0
        %200 = vmatprep.subr.mxu0 0.0
        %201 = vmatpush1.msra.mxu0 %v176
        %202 = vmatprep.subr.mxu0 0.0
        %203 = vmatpush1.msra.mxu0 %v177
        %204 = vmatprep.subr.mxu0 0.0
        %205 = vmatpush1.msra.mxu0 %v178
        %206 = vmatprep.subr.mxu0 0.0
        %207 = vmatpush1.msra.mxu0 %v179
        %208 = vmatprep.subr.mxu0 0.0
        %209 = vmatpush1.msra.mxu0 0.0
        %210 = vmatprep.subr.mxu0 0.0
        %211 = vmatpush1.msra.mxu0 0.0
        %212 = vmatprep.subr.mxu0 0.0
        %213 = vmatpush1.msra.mxu0 0.0
        %214 = vmatprep.subr.mxu0 0.0
        %215 = vmatpush1.msra.mxu0 0.0
        %216 = vmatprep.subr.mxu0 0.0
        %217 = vmatpush1.msra.mxu0 0.0
        %218 = vmatprep.subr.mxu0 0.0
        %219 = vmatpush1.msra.mxu0 0.0
        %220 = vmatprep.subr.mxu0 0.0
        %221 = vmatpush1.msra.mxu0 0.0
        %222 = vmatprep.subr.mxu0 0.0
        %223 = vmatpush1.msra.mxu0 0.0
        %224 = vmatprep.subr.mxu0 0.0
        %225 = vmatpush1.msra.mxu0 0.0
        %226 = vmatprep.subr.mxu0 0.0
        %227 = vmatpush1.msra.mxu0 0.0
        %228 = vmatprep.subr.mxu0 0.0
        %229 = vmatpush1.msra.mxu0 0.0
        %230 = vmatprep.subr.mxu0 0.0
        %231 = vmatpush1.msra.mxu0 0.0
        %232 = vmatprep.subr.mxu0 0.0
        %233 = vmatpush1.msra.mxu0 0.0
        %234 = vmatprep.subr.mxu0 0.0
        %235 = vmatpush1.msra.mxu0 0.0
        %236 = vmatprep.subr.mxu0 0.0
        %237 = vmatpush1.msra.mxu0 0.0
        %238 = vmatprep.subr.mxu0 0.0
        %239 = vmatpush1.msra.mxu0 0.0
        %240 = vmatprep.subr.mxu0 0.0
        %241 = vmatpush1.msra.mxu0 0.0
        %242 = vmatprep.subr.mxu0 0.0
        %243 = vmatpush1.msra.mxu0 0.0
        %244 = vmatprep.subr.mxu0 0.0
        %245 = vmatpush1.msra.mxu0 0.0
        %246 = vmatprep.subr.mxu0 0.0
        %247 = vmatpush1.msra.mxu0 0.0
        %248 = vmatprep.subr.mxu0 0.0
        %249 = vmatpush1.msra.mxu0 0.0
        %250 = vmatprep.subr.mxu0 0.0
        %251 = vmatpush1.msra.mxu0 0.0
        %252 = vmatprep.subr.mxu0 0.0
        %253 = vmatpush1.msra.mxu0 0.0
        %254 = vmatprep.subr.mxu0 0.0
        %255 = vmatpush1.msra.mxu0 0.0
        %256 = vmatprep.subr.mxu0 0.0
        %257 = vmatpush1.msra.mxu0 0.0
        %258 = vmatprep.subr.mxu0 0.0
        %259 = vmatpush1.msra.mxu0 0.0
        %260 = vmatprep.subr.mxu0 0.0
        %261 = vmatpush1.msra.mxu0 0.0
        %262 = vmatprep.subr.mxu0 0.0
        %263 = vmatpush1.msra.mxu0 0.0
        %264 = vmatprep.mubr.f32.mxu0 0.0
        %265 = vmatmul.mubr.f32.gmra.mrb[0].mxu0 %v189
        %v266 = vpop.f32.mrb[0].mxu0
        %v267 = vadd.f32 %v185, %v266
        %v268 = vpop.f32.mrb[0].mxu0
        %269 = vmatprep.mubr.f32.mxu0 0.0
        %270 = vmatmul.mubr.f32.gmra.mrb[0].mxu0 %v192
        %v271 = vpop.f32.mrb[0].mxu0
        %v272 = vadd.f32 %v185, %v271
        %v273 = vpop.f32.mrb[0].mxu0
        %274 = vmatprep.mubr.f32.mxu0 0.0
        %275 = vmatmul.mubr.f32.gmra.mrb[0].mxu0 %v195
        %v276 = vpop.f32.mrb[0].mxu0
        %v277 = vadd.f32 %v185, %v276
        %v278 = vpop.f32.mrb[0].mxu0
        %279 = vmatprep.mubr.f32.mxu0 0.0
        %280 = vmatmul.mubr.f32.gmra.mrb[0].mxu0 %v198
        %v281 = vpop.f32.mrb[0].mxu0
        %v282 = vadd.f32 %v185, %v281
        %v283 = vpop.f32.mrb[0].mxu0
        %284 = vdwg.mxu0
        %285 = vst [vmem:[%s164] sm:$0xff] %v267
        %286 = vst [vmem:[%s164 + $0x8] sm:$0xff] %v272
        %287 = vst [vmem:[%s164 + $0x10] sm:$0xff] %v277
        %288 = vst [vmem:[%s164 + $0x18] sm:$0xff] %v282
        %s289 = sand.u32 %s93, 1
        %s290 = scalar_lea.sflag [#allocation3], %s289
        %s291 = sand.u32 %s93, 1
        %s292 = smul.addr %s291, 32
        %s293 = scalar_lea.vmem [#allocation2], %s292
        // Predicated region
        $region33: #{tpu_custom_call.1} parent=31 // pred_check
          %p294 = pneg %p103
        $region34: #{tpu_custom_call.1} parent=31 // pred_check_branch
          %296 = sbr.rel (%p294) target = $region36
        $region35: #{tpu_custom_call.1} parent=31 // pred_region
          %s297 = smul.u32 4, %s17
          %s299 = ssub.s32 512, 512
          %300 = vsyncadd %s290, %s299
          %s301 = smul.addr %s297, 128
          %s302 = scalar_lea.hbm %s3, %s301
          %s303 = sshll.u32 %s293, 4
          %s304 = int_to_ptr.vmem [resolvable:$true] %s303
          %309 = dma.vmem_to_hbm [thread:$0]  %s304, 512, %s302, %s290, 128, 128, 8
        $region36: #{tpu_custom_call.1} parent=31 // pred_fallthru
          _
      $region32: #{tpu_custom_call.1} parent=5 // pred_fallthru
        _
      %p310 = scmp.le.s32.totalorder 2, %s12
      // Predicated region
      $region37: #{tpu_custom_call.1} parent=5 // pred_check
        %p311 = pneg %p310
      $region38: #{tpu_custom_call.1} parent=5 // pred_check_branch
        %313 = sbr.rel (%p311) target = $region40
      $region39: #{tpu_custom_call.1} parent=5 // pred_region
        %s314 = ssub.s32 %s12, 2
        // Predicated region
        $region41: #{tpu_custom_call.1} parent=39 // pred_check
          %p315 = pneg %p109
        $region42: #{tpu_custom_call.1} parent=39 // pred_check_branch
          %317 = sbr.rel (%p315) target = $region44
        $region43: #{tpu_custom_call.1} parent=39 // pred_region
          %s318 = sand.u32 %s94, 1
          %s319 = scalar_lea.sflag [#allocation3], %s318
          %s320 = sand.u32 %s94, 1
          %s321 = smul.addr %s320, 32
          %s322 = scalar_lea.vmem [#allocation2], %s321
          %323 = dma.done %s319, 512
        $region44: #{tpu_custom_call.1} parent=39 // pred_fallthru
          _
      $region40: #{tpu_custom_call.1} parent=5 // pred_fallthru
        _
    $region6: #{tpu_custom_call.1} parent=1 // loop_footer
      %s16 = sadd.s32 1, %s12
    $region7: #{tpu_custom_call.1} parent=1 // loop_footer_branch
      %11 = sbr.rel target = $region3
    $region8: #{tpu_custom_call.1} parent=1 // loop_exit
      _
    %324 = vsyncpa [#allocation3], 1
    %s325 = scalar_lea.sflag [#allocation3], 1
    %326 = vsyncpa %s325, 1

</llo_original>
